<compile_context>
chip_gen: v7x
topology: tpu7x:2x2x1
jax: 0.10.0
libtpu: 0.0.40
codegen_flags: <defaults>
</compile_context>

<pallas_src>
import jax
import jax.numpy as jnp
from jax.experimental import pallas as pl
from jax.experimental.pallas import tpu as pltpu


def _patch_proj_kernel(x_ref, w_ref, pp_ref, o_ref):
    # x_ref:  (TM, P)  bf16  — TM = Bb * N flattened patch rows for this step
    # w_ref:  (P, L)   bf16  — pre-transposed nn.Linear weight (grid-resident)
    # pp_ref: (TM, L)  f32   — (bias + pos_embedding[1:]) tiled to TM rows
    # o_ref:  (TM, L)  f32   — projected patches (+ bias + pos), offset-0 store
    proj = jnp.dot(x_ref[...], w_ref[...],
                   preferred_element_type=jnp.float32)   # MXU, f32 accumulate
    o_ref[...] = proj + pp_ref[...]
    # TODO(synk): dropout is identity here (eval mode); training-mode dropout
    # would use pltpu.prng_seed + pltpu.stateful_bernoulli.


def _pick_batch_tile(B, N, P, L, act_bytes, tile_budget_bytes):
    """Pick Bb (batch elements per grid step) so Bb | B and tiles stay in VMEM."""
    # Streamed per-batch-element bytes: x block (bf16) + out block (f32),
    # double-buffered by the auto-pipeline.  W / bias+pos are resident singles.
    per_b = 2 * N * (P * act_bytes + L * 4)
    bb_vmem = max(1, tile_budget_bytes // max(per_b, 1))
    bb_rows = max(1, -(-256 // N))           # aim for >=256 MXU rows per step
    bb = int(min(B, bb_vmem, bb_rows))
    while bb > 1 and B % bb != 0:            # grid needs B % Bb == 0
        bb -= 1
    # v7x megacore: prefer >=2 (even) grid steps, but only if tiles stay large.
    if B // bb == 1 and B % 2 == 0 and (B // 2) * N >= 256:
        bb = B // 2
    return bb


def linear_projection(x, weight, bias, cls_token, pos_embedding,
                      *, compute_dtype=jnp.bfloat16,
                      vmem_limit_bytes=48 * 1024 * 1024):
    """x: (B, N, P) f32 -> (B, N+1, L) f32 (LinearProjection.forward, eval)."""
    B, N, P = x.shape
    L = weight.shape[0]
    pos = pos_embedding.reshape(N + 1, L)                 # squeeze leading 1

    # --- batch-invariant precompute (one-time wrapper cost) -----------------
    w_t = weight.T.astype(compute_dtype)                  # (P, L), no .T in-kernel
    bias_plus_pos = (bias[None, :] + pos[1:]).astype(jnp.float32)   # (N, L)
    cls_plus_pos0 = (cls_token + pos[0:1]).astype(jnp.float32)      # (1, L)

    act_bytes = jnp.dtype(compute_dtype).itemsize
    bb = _pick_batch_tile(B, N, P, L, act_bytes, vmem_limit_bytes // 2)
    tm = bb * N                                           # rows per grid step
    grid = (B // bb,)

    x_flat = x.reshape(B * N, P).astype(compute_dtype)    # (B*N, P), lane=P
    pp_tile = jnp.tile(bias_plus_pos, (bb, 1))            # (TM, L), grid-invariant

    flops = 2 * B * N * P * L
    bytes_accessed = (B * N * P * act_bytes + P * L * act_bytes
                      + tm * L * 4 + B * N * L * 4)

    out_flat = pl.pallas_call(
        _patch_proj_kernel,
        out_shape=jax.ShapeDtypeStruct((B * N, L), jnp.float32),
        grid_spec=pltpu.PrefetchScalarGridSpec(
            num_scalar_prefetch=0,
            grid=grid,
            in_specs=[
                pl.BlockSpec((tm, P), lambda i: (i, 0)),   # streamed x rows
                pl.BlockSpec((P, L), lambda i: (0, 0)),    # resident weight
                pl.BlockSpec((tm, L), lambda i: (0, 0)),   # resident bias+pos
            ],
            out_specs=pl.BlockSpec((tm, L), lambda i: (i, 0)),
        ),
        compiler_params=pltpu.CompilerParams(
            dimension_semantics=("parallel",),
            vmem_limit_bytes=vmem_limit_bytes),
        cost_estimate=pl.CostEstimate(flops=flops, transcendentals=0,
                                      bytes_accessed=bytes_accessed),
    )(x_flat, w_t, pp_tile)

    proj = out_flat.reshape(B, N, L)
    cls_rows = jnp.broadcast_to(cls_plus_pos0[None, :, :], (B, 1, L))
    return jnp.concatenate([cls_rows, proj], axis=1)      # (B, N+1, L)


def reference(x, weight, bias, cls_token, pos_embedding):
    B = x.shape[0]
    proj = jnp.einsum("bnp,lp->bnl", x, weight) + bias
    cls = jnp.broadcast_to(cls_token[None, :, :], (B, 1, weight.shape[0]))
    out = jnp.concatenate([cls, proj], axis=1)
    return out + pos_embedding


if __name__ == "__main__":
    # Small shapes consistent with the module:
    batch = 2
    num_patches = 16
    patch_vec_size = 48     # e.g. 4x4 patches of a 3-channel image
    latent_vec_dim = 32

    key = jax.random.PRNGKey(0)
    kx, kw, kb, kc, kp = jax.random.split(key, 5)

    x = jax.random.normal(kx, (batch, num_patches, patch_vec_size), jnp.float32)
    weight = jax.random.normal(kw, (latent_vec_dim, patch_vec_size),
                               jnp.float32) * 0.02
    bias = jax.random.normal(kb, (latent_vec_dim,), jnp.float32) * 0.02
    cls_token = jax.random.normal(kc, (1, latent_vec_dim), jnp.float32)
    pos_embedding = jax.random.normal(
        kp, (1, num_patches + 1, latent_vec_dim), jnp.float32)

    out = linear_projection(x, weight, bias, cls_token, pos_embedding)
    out = jax.block_until_ready(out)
    assert out.shape == (batch, num_patches + 1, latent_vec_dim)

    # Tight check vs. a reference that uses the same bf16-quantized operands
    # (kernel accumulates in f32 on the MXU).
    x_q = x.astype(jnp.bfloat16).astype(jnp.float32)
    w_q = weight.astype(jnp.bfloat16).astype(jnp.float32)
    ref_bf16 = reference(x_q, w_q, bias, cls_token, pos_embedding)
    assert jnp.allclose(out, ref_bf16, atol=1e-4, rtol=1e-4)

    # Loose check vs. the pure-f32 module semantics (bf16 input rounding only).
    ref_f32 = reference(x, weight, bias, cls_token, pos_embedding)
    assert jnp.allclose(out, ref_f32, atol=5e-2, rtol=5e-2)

    print("KERNEL_OK")
</pallas_src>

<mosaic_0001>
module attributes {stable_mosaic.version = 11 : i64} {
  func.func @_patch_proj_kernel(%arg0: i32, %arg1: memref<32x48xbf16, #tpu.memory_space<vmem>>, %arg2: memref<48x32xbf16, #tpu.memory_space<vmem>>, %arg3: memref<32x32xf32, #tpu.memory_space<vmem>>, %arg4: memref<32x32xf32, #tpu.memory_space<vmem>>) attributes {dimension_semantics = [#tpu.dimension_semantics<parallel>], iteration_bounds = array<i64: 1>, scalar_prefetch = 0 : i64, scratch_operands = 0 : i64, tpu.core_type = #tpu.core_type<tc>, window_params = [{transform_indices = @transform_0, window_bounds = array<i64: 32, 48>}, {pipeline_mode = #tpu.pipeline_mode<synchronous>, transform_indices = @transform_1, window_bounds = array<i64: 48, 32>}, {pipeline_mode = #tpu.pipeline_mode<synchronous>, transform_indices = @transform_2, window_bounds = array<i64: 32, 32>}, {transform_indices = @transform_3, window_bounds = array<i64: 32, 32>}]} {
    %c0 = arith.constant 0 : index
    %c0_0 = arith.constant 0 : index
    %0 = vector.load %arg1[%c0, %c0_0] : memref<32x48xbf16, #tpu.memory_space<vmem>>, vector<32x48xbf16>
    %c0_1 = arith.constant 0 : index
    %c0_2 = arith.constant 0 : index
    %1 = vector.load %arg2[%c0_1, %c0_2] : memref<48x32xbf16, #tpu.memory_space<vmem>>, vector<48x32xbf16>
    %cst = arith.constant dense<0.000000e+00> : vector<32x32xf32>
    %2 = tpu.matmul %0, %1, %cst {dimension_numbers = #tpu.dot_dimension_numbers<[1], [0], [0], [1], [0, 0, 1, 1], [], []>} : vector<32x48xbf16>, vector<48x32xbf16>, vector<32x32xf32> -> vector<32x32xf32>
    %c0_3 = arith.constant 0 : index
    %c0_4 = arith.constant 0 : index
    %3 = vector.load %arg3[%c0_3, %c0_4] : memref<32x32xf32, #tpu.memory_space<vmem>>, vector<32x32xf32>
    %4 = arith.addf %2, %3 : vector<32x32xf32>
    %c0_5 = arith.constant 0 : index
    %c0_6 = arith.constant 0 : index
    %5 = vector.load %arg4[%c0_5, %c0_6] : memref<32x32xf32, #tpu.memory_space<vmem>>, vector<32x32xf32>
    tpu.vector_store %arg4[%c0_5, %c0_6], %4 {strides = array<i32>} : memref<32x32xf32, #tpu.memory_space<vmem>>, vector<32x32xf32>,
    return
  }
  func.func @transform_0(%arg0: i32) -> (i32, i32) {
    %c0_i32 = arith.constant 0 : i32
    %c0_i32_0 = arith.constant 0 : i32
    return %arg0, %c0_i32 : i32, i32
  }
  func.func @transform_1(%arg0: i32) -> (i32, i32) {
    %c0_i32 = arith.constant 0 : i32
    %c0_i32_0 = arith.constant 0 : i32
    %c0_i32_1 = arith.constant 0 : i32
    return %c0_i32, %c0_i32_0 : i32, i32
  }
  func.func @transform_2(%arg0: i32) -> (i32, i32) {
    %c0_i32 = arith.constant 0 : i32
    %c0_i32_0 = arith.constant 0 : i32
    %c0_i32_1 = arith.constant 0 : i32
    return %c0_i32, %c0_i32_0 : i32, i32
  }
  func.func @transform_3(%arg0: i32) -> (i32, i32) {
    %c0_i32 = arith.constant 0 : i32
    %c0_i32_0 = arith.constant 0 : i32
    return %arg0, %c0_i32 : i32, i32
  }
}

</mosaic_0001>

<llo_original>
// kernel: tpu_custom_call.1
$region0: #{tpu_custom_call.1}
  #allocation0 [shape = 'u32[]', space=smem, size = 0x4, offset = 0x4, fixed_abs, tag = 'smem constant byte address 0x4 - core index']
  #allocation1 [shape = 'u32[144,128]{1,0:T(1,128)}', space=vmem, size = 0x12000, scoped, tag = 'internal scratch']
  %s0 = inlined_call_operand.hbm [shape: bf16[32,48], index: 0, kind: input, shape index: {}]
  %s1 = inlined_call_operand.vmem [shape: bf16[48,32], index: 1, kind: input, shape index: {}]
  %s2 = inlined_call_operand.vmem [shape: f32[32,32], index: 2, kind: input, shape index: {}]
  %s3 = inlined_call_operand.hbm [shape: f32[32,32], index: 3, kind: output, shape index: {}]
  %s4 = sld [smem:[#allocation0]]
  $region26: #{tpu_custom_call.1} parent=0
    _
  %s6 = ssub.s32 1, %s4
  %s7 = scalar_select 0, %s6, %s4
  $region1: #{tpu_custom_call.1} parent=0
    #allocation2 [shape = 'u8[8192]{0}', space=vmem, size = 0x2000, scoped, tag = 'input window, operand 0, single buffered']
    #allocation3 [shape = 's32[1]{0}', space=sflag, size = 0x4, scoped, tag = 'scoped memory for tpu_custom_call.1']
    #allocation4 [shape = 's32[1]{0}', space=sflag, size = 0x4, scoped, tag = 'scoped memory for tpu_custom_call.1']
    #allocation5 [shape = 'u8[16384]{0}', space=vmem, size = 0x4000, scoped, tag = 'output window, operand 0, single buffered']
    %8 = vsyncpa [#allocation3], 0
    %9 = vsyncpa [#allocation4], 0
    // Predicated region
    $region2: #{tpu_custom_call.1} parent=1 // pred_check
      _
    $region3: #{tpu_custom_call.1} parent=1 // pred_check_branch
      %11 = sbr.rel (0) target = $region5
    $region4: #{tpu_custom_call.1} parent=1 // pred_region
      %s13 = ssub.s32 256, 256
      %14 = vsyncadd [#allocation3], %s13
      %s15 = sshll.u32 [#allocation2], 4
      %s16 = int_to_ptr.vmem [resolvable:$true] %s15
      %21 = dma.hbm_to_vmem [thread:$0]  %s0, 256, %s16, [#allocation3], 64, 64, 4
    $region5: #{tpu_custom_call.1} parent=1 // pred_fallthru
      _
    // Predicated region
    $region6: #{tpu_custom_call.1} parent=1 // pred_check
      _
    $region7: #{tpu_custom_call.1} parent=1 // pred_check_branch
      %23 = sbr.rel (0) target = $region9
    $region8: #{tpu_custom_call.1} parent=1 // pred_region
      _
    $region9: #{tpu_custom_call.1} parent=1 // pred_fallthru
      _
    // Predicated region
    $region10: #{tpu_custom_call.1} parent=1 // pred_check
      _
    $region11: #{tpu_custom_call.1} parent=1 // pred_check_branch
      %25 = sbr.rel (0) target = $region13
    $region12: #{tpu_custom_call.1} parent=1 // pred_region
      _
    $region13: #{tpu_custom_call.1} parent=1 // pred_fallthru
      _
    // Predicated region
    $region14: #{tpu_custom_call.1} parent=1 // pred_check
      _
    $region15: #{tpu_custom_call.1} parent=1 // pred_check_branch
      %27 = sbr.rel (0) target = $region17
    $region16: #{tpu_custom_call.1} parent=1 // pred_region
      %28 = dma.done [#allocation3], 256
    $region17: #{tpu_custom_call.1} parent=1 // pred_fallthru
      _
    %v30 = vld [vmem:[#allocation2] sm:$0xf]
    %v31 = vld [vmem:[#allocation2 + $0x4] sm:$0xf]
    %v32 = vld [vmem:[#allocation2 + $0x8] sm:$0xf]
    %v33 = vld [vmem:[#allocation2 + $0xc] sm:$0xf]
    %v34 = vld [vmem:[%s1] sm:$0xf]
    %v35 = vld [vmem:[%s1 + $0x4] sm:$0xf]
    %v36 = vld [vmem:[%s1 + $0x8] sm:$0xf]
    %v37 = vld [vmem:[%s1 + $0xc] sm:$0xf]
    %v38 = vld [vmem:[%s1 + $0x10] sm:$0xf]
    %v39 = vld [vmem:[%s1 + $0x14] sm:$0xf]
    %v40 = vld [vmem:[%s2] sm:$0xff]
    %v41 = vld [vmem:[%s2 + $0x8] sm:$0xff]
    %v42 = vld [vmem:[%s2 + $0x10] sm:$0xff]
    %v43 = vld [vmem:[%s2 + $0x18] sm:$0xff]
    %v48 = vunpack.c.l.b16 %v30
    %v49 = vunpack.c.l.b16 %v31
    %v50 = vunpack.c.l.b16 %v32
    %v51 = vunpack.c.l.b16 %v33
    %v52 = vpack.c.b16 %v49, %v48
    %v53 = vpack.c.b16 %v51, %v50
    %v60 = vunpack.c.l.b16 %v34
    %v61 = vunpack.c.l.b16 %v35
    %v62 = vunpack.c.l.b16 %v36
    %v63 = vunpack.c.l.b16 %v37
    %v64 = vunpack.c.l.b16 %v38
    %v65 = vunpack.c.l.b16 %v39
    %v66 = vpack.c.b16 %v61, %v60
    %v67 = vpack.c.b16 %v63, %v62
    %v68 = vpack.c.b16 %v65, %v64
    %vm72 = vcmask 392192
    %v74 = vsel %vm72, %v52, 0
    %v77 = vsel %vm72, %v53, 0
    %79 = vmatprep.subr.bf16.mxu0 0
    %80 = vmatpush1.bf16.msra.mxu0 %v66
    %81 = vmatprep.subr.bf16.mxu0 0
    %82 = vmatpush1.bf16.msra.mxu0 %v67
    %83 = vmatprep.subr.bf16.mxu0 0
    %84 = vmatpush1.bf16.msra.mxu0 %v68
    %85 = vmatprep.subr.bf16.mxu0 0
    %86 = vmatpush1.bf16.msra.mxu0 0
    %87 = vmatprep.subr.bf16.mxu0 0
    %88 = vmatpush1.bf16.msra.mxu0 0
    %89 = vmatprep.subr.bf16.mxu0 0
    %90 = vmatpush1.bf16.msra.mxu0 0
    %91 = vmatprep.subr.bf16.mxu0 0
    %92 = vmatpush1.bf16.msra.mxu0 0
    %93 = vmatprep.subr.bf16.mxu0 0
    %94 = vmatpush1.bf16.msra.mxu0 0
    %95 = vmatprep.subr.bf16.mxu0 0
    %96 = vmatpush1.bf16.msra.mxu0 0
    %97 = vmatprep.subr.bf16.mxu0 0
    %98 = vmatpush1.bf16.msra.mxu0 0
    %99 = vmatprep.subr.bf16.mxu0 0
    %100 = vmatpush1.bf16.msra.mxu0 0
    %101 = vmatprep.subr.bf16.mxu0 0
    %102 = vmatpush1.bf16.msra.mxu0 0
    %103 = vmatprep.subr.bf16.mxu0 0
    %104 = vmatpush1.bf16.msra.mxu0 0
    %105 = vmatprep.subr.bf16.mxu0 0
    %106 = vmatpush1.bf16.msra.mxu0 0
    %107 = vmatprep.subr.bf16.mxu0 0
    %108 = vmatpush1.bf16.msra.mxu0 0
    %109 = vmatprep.subr.bf16.mxu0 0
    %110 = vmatpush1.bf16.msra.mxu0 0
    %111 = vmatprep.mubr.bf16.mxu0 0
    %112 = vmatmul.mubr.bf16.gmra.mrb[0].mxu0 %v74
    %v113 = vpop.f32.mrb[0].mxu0
    %v114 = vadd.f32 %v40, %v113
    %v115 = vpop.f32.mrb[0].mxu0
    %v116 = vpop.f32.mrb[0].mxu0
    %v117 = vadd.f32 %v41, %v116
    %v118 = vpop.f32.mrb[0].mxu0
    %119 = vmatprep.mubr.bf16.mxu0 0
    %120 = vmatmul.mubr.bf16.gmra.mrb[0].mxu0 %v77
    %v121 = vpop.f32.mrb[0].mxu0
    %v122 = vadd.f32 %v42, %v121
    %v123 = vpop.f32.mrb[0].mxu0
    %v124 = vpop.f32.mrb[0].mxu0
    %v125 = vadd.f32 %v43, %v124
    %v126 = vpop.f32.mrb[0].mxu0
    %127 = vdwg.mxu0
    %vm128 = vcmask 261120
    %129 = vst.msk [vmem:[#allocation5] sm:$0xff] %vm128, %v114
    %130 = vst.msk [vmem:[#allocation5 + $0x8] sm:$0xff] %vm128, %v117
    %131 = vst.msk [vmem:[#allocation5 + $0x10] sm:$0xff] %vm128, %v122
    %132 = vst.msk [vmem:[#allocation5 + $0x18] sm:$0xff] %vm128, %v125
    // Predicated region
    $region18: #{tpu_custom_call.1} parent=1 // pred_check
      _
    $region19: #{tpu_custom_call.1} parent=1 // pred_check_branch
      %134 = sbr.rel (0) target = $region21
    $region20: #{tpu_custom_call.1} parent=1 // pred_region
      %s136 = ssub.s32 512, 512
      %137 = vsyncadd [#allocation4], %s136
      %s138 = sshll.u32 [#allocation5], 4
      %s139 = int_to_ptr.vmem [resolvable:$true] %s138
      %144 = dma.vmem_to_hbm [thread:$0]  %s139, 512, %s3, [#allocation4], 128, 128, 8
    $region21: #{tpu_custom_call.1} parent=1 // pred_fallthru
      _
    // Predicated region
    $region22: #{tpu_custom_call.1} parent=1 // pred_check
      _
    $region23: #{tpu_custom_call.1} parent=1 // pred_check_branch
      %146 = sbr.rel (0) target = $region25
    $region24: #{tpu_custom_call.1} parent=1 // pred_region
      %147 = dma.done [#allocation4], 512
    $region25: #{tpu_custom_call.1} parent=1 // pred_fallthru
      _
    %148 = vsyncpa [#allocation3], 1
    %149 = vsyncpa [#allocation4], 1

</llo_original>
